<compile_context>
chip_gen: v7x
topology: tpu7x:2x2x1
jax: 0.10.0
libtpu: 0.0.40
codegen_flags: <defaults>
</compile_context>

<pallas_src>
import functools

import numpy as np
import jax
import jax.numpy as jnp
from jax import lax
from jax.experimental import pallas as pl
from jax.experimental.pallas import tpu as pltpu

# constants from the PyTorch module
CART_MEAN = 6.9936892028873965
CART_STD = 3.528368101492991
SEQ_LOG_MEAN = 3.5567875815104903
SEQ_LOG_STD = 1.7065822763411669
NEG_SLOPE = 0.01  # F.leaky_relu default


def _leaky_relu(x):
    return jnp.where(x > 0, x, NEG_SLOPE * x)


# ---------------------------------------------------------------------------
# Standalone RepeatPad kernel (the literal spec module):
#   out = cat([x, x[:, :, :padding]], dim=2)
# Two stores into the output block (no concat copy), gridded over the batch so
# VMEM stays bounded for large inputs.  NOTE: the second store lands at lane
# offset L (not 128-aligned in general) -- inherent to the op's semantics.
# ---------------------------------------------------------------------------
def repeat_pad_kernel(x_ref, o_ref, *, l, pad):
    x = x_ref[...]                                  # (1, C, L)
    o_ref[:, :, pl.ds(0, l)] = x
    o_ref[:, :, pl.ds(l, pad)] = x[:, :, :pad]


def repeat_pad(x, padding):
    if padding == 0:
        return x
    B, C, L = x.shape
    pad_eff = min(padding, L)     # torch slicing x[:, :, :padding] clamps at L
    return pl.pallas_call(
        functools.partial(repeat_pad_kernel, l=L, pad=pad_eff),
        out_shape=jax.ShapeDtypeStruct((B, C, L + pad_eff), x.dtype),
        grid=(B,),
        in_specs=[pl.BlockSpec((1, C, L), lambda b: (b, 0, 0))],
        out_specs=pl.BlockSpec((1, C, L + pad_eff), lambda b: (b, 0, 0)),
        compiler_params=pltpu.CompilerParams(dimension_semantics=("parallel",)),
    )(x)


# ---------------------------------------------------------------------------
# Fused kernel: PairwiseConv (+ReLU) -> Conv1d(k=3,s=2,p=1) -> RepeatPad(63)
#               -> MaxPool1d(64) -> Conv1d(1x1), `block_b` batch elements per
# grid step.  Everything between the batch-stacked gather matmul and the final
# (block_b, 1, n_windows) output stays in VMEM / vregs.
# ---------------------------------------------------------------------------
def fused_kernel(x2_ref, adjT_ref, ybc_ref, wx01_ref, rev_ref, wk_ref,
                 bconv_ref, wf_ref, bf_ref, out_ref, *,
                 bblk, cin, npad, l2, pool_k, n_windows, n_full):
    # Stage 1: batch-stacked gather against the lane-merged [adjT_e | adjT_o]:
    # ONE MXU matmul with M = bblk*cin rows (instead of 2*bblk matmuls with M=cin).
    xg = jnp.dot(x2_ref[...], adjT_ref[...].astype(jnp.float32),
                 preferred_element_type=jnp.float32)           # (bblk*cin, 2*npad)

    ybc = ybc_ref[...]         # (Cout, 3*l2)  barcode pre-folded through the scatter
    wx01 = wx01_ref[...]       # (Cout, 2*cin) merged spatial-conv weights [wx0 | wx1]
    rev = rev_ref[...].astype(jnp.float32)   # (npad, 3*l2)  [rev_ev | rev_od | rev_left]
    wk = wk_ref[...]           # (Chid, 3*Cout) merged k=3 conv weights [wk1 | wk2 | wk0]
    bconv = bconv_ref[...]     # (Chid, 1)
    wf = wf_ref[...]           # (1, Chid)
    bf = bf_ref[...]           # (1, 1)

    # Static unroll over the batch block (bblk is small); the output block is the
    # whole batch block, so writeback DMA happens once per grid step regardless.
    for b in range(bblk):
        xg_b = xg[b * cin:(b + 1) * cin, :]                    # (cin, 2*npad)
        # K-stack the even/odd gather halves (npad is a multiple of 128, so both
        # lane slices are tile-aligned) -> one spatial-conv matmul with K=2*cin.
        xg_stack = jnp.concatenate([xg_b[:, :npad], xg_b[:, npad:]], axis=0)
        z = jnp.dot(wx01, xg_stack, preferred_element_type=jnp.float32)   # (Cout, npad)

        # One scatter matmul produces ALL THREE stride-2 conv taps (ev | od | left),
        # with the batch-invariant barcode contribution added before the fused ReLU.
        y = jnp.maximum(ybc + jnp.dot(z, rev, preferred_element_type=jnp.float32),
                        0.0)                                   # (Cout, 3*l2)

        # K-stack the taps -> one conv matmul with K = 3*Cout.
        y_stack = jnp.concatenate([y[:, :l2], y[:, l2:2 * l2], y[:, 2 * l2:]], axis=0)
        h = jnp.dot(wk, y_stack, preferred_element_type=jnp.float32) + bconv  # (Chid, l2)

        # RepeatPad(63) + MaxPool1d(64) without materializing the padded tensor:
        # full windows via reshape+reduce, the single wrap-around window via two
        # partial maxima (the wrap covers at most one window since 63 < 64).
        chid = h.shape[0]
        cols = []
        if n_full > 0:
            bulk = h[:, :n_full * pool_k].reshape(chid, n_full, pool_k)
            cols.append(jnp.max(bulk, axis=-1))                # (Chid, n_full)
        if n_windows > n_full:                                 # wrap-around window
            s = n_full * pool_k
            parts = []
            if s < l2:
                parts.append(jnp.max(h[:, s:l2], axis=1, keepdims=True))
            head_len = s + pool_k - l2
            if head_len > 0:
                parts.append(jnp.max(h[:, :min(head_len, l2)], axis=1, keepdims=True))
            cols.append(parts[0] if len(parts) == 1 else jnp.maximum(parts[0], parts[1]))
        m = cols[0] if len(cols) == 1 else jnp.concatenate(cols, axis=1)   # (Chid, nw)

        # final 1x1 conv for this batch element
        out_ref[b] = jnp.dot(wf, m, preferred_element_type=jnp.float32) + bf


def fused_pairwise_layer_n(seq2, batch, cin, adjT_eo, y_bc_all, wx01, rev_all,
                           wk_all, b_conv, wf, bf, *, pool_k=64,
                           repeat_pad_len=63, block_b=None):
    bcin, L = seq2.shape
    assert bcin == batch * cin
    assert L % 2 == 0, "even sequence length assumed for the stride-2 tap split"
    npad = adjT_eo.shape[1] // 2
    l2 = rev_all.shape[1] // 3
    pad_len = min(repeat_pad_len, l2)        # exact RepeatPad semantics (slice clamps)
    lp = l2 + pad_len
    assert lp >= pool_k, "sequence too short for MaxPool1d(64) after RepeatPad"
    n_windows = (lp - pool_k) // pool_k + 1
    n_full = min(n_windows, l2 // pool_k)
    assert n_windows - n_full <= 1           # 63 < 64 => at most one wrap window

    # Batch blocking: block_b batches stacked into the gather matmul's M dimension.
    if block_b is None:
        block_b = batch if batch <= 8 else max(d for d in (8, 4, 2, 1) if batch % d == 0)
    assert batch % block_b == 0
    assert block_b == batch or (block_b * cin) % 8 == 0, \
        "sub-batch block must be sublane-aligned"
    grid_b = batch // block_b
    # TODO(synk): on v7x pick block_b so grid_b is even (two TensorCores share the
    # 'parallel' batch axis); on v5e/v6e the grid is a serial loop so block_b is the lever.

    consts = (adjT_eo, y_bc_all, wx01, rev_all, wk_all, b_conv, wf, bf)
    # Grid-invariant operands (constant index_map).
    # TODO(synk): mark these pipeline_mode=pl.Buffered(1) and tile the npad axis as an
    # inner 'arbitrary' reduction grid axis once L/E grow toward v7x's 64 MiB VMEM.
    const_specs = [pl.BlockSpec(a.shape, lambda i: (0, 0)) for a in consts]

    cout = wx01.shape[0]
    chid = wk_all.shape[0]
    flops_per_step = 2 * (
        block_b * cin * L * 2 * npad                 # gather
        + block_b * cout * 2 * cin * npad            # spatial conv
        + block_b * cout * npad * 3 * l2             # scatter (all three taps)
        + block_b * chid * 3 * cout * l2             # layer_n k=3 conv
        + block_b * 1 * chid * n_windows)            # final 1x1 conv
    const_bytes = sum(int(np.prod(a.shape)) * a.dtype.itemsize for a in consts)
    io_bytes = int(seq2.size) * seq2.dtype.itemsize + batch * n_windows * 4 + const_bytes
    cost = pl.CostEstimate(flops=int(grid_b * flops_per_step), transcendentals=0,
                           bytes_accessed=int(io_bytes))

    vmem_bytes = int(min(100 * 2 ** 20,
                         max(32 * 2 ** 20, 4 * const_bytes + 8 * int(seq2.size) * 4)))

    kern = functools.partial(fused_kernel, bblk=block_b, cin=cin, npad=npad, l2=l2,
                             pool_k=pool_k, n_windows=n_windows, n_full=n_full)
    return pl.pallas_call(
        kern,
        out_shape=jax.ShapeDtypeStruct((batch, 1, n_windows), jnp.float32),
        grid=(grid_b,),
        in_specs=[pl.BlockSpec((block_b * cin, L), lambda i: (i, 0))] + const_specs,
        out_specs=pl.BlockSpec((block_b, 1, n_windows), lambda i: (i, 0, 0)),
        compiler_params=pltpu.CompilerParams(
            dimension_semantics=("parallel",),
            vmem_limit_bytes=vmem_bytes),
        cost_estimate=cost,
    )(seq2, *consts)


# ---------------------------------------------------------------------------
# Host-side glue: sparse -> dense adjacency structures (lane-padded, merged
# even/odd gather, merged 3-tap scatter) and normalized distance features.
# ---------------------------------------------------------------------------
def build_dense_adj(adj_idx, adj_val, seq_len, max_distance):
    mask = adj_val <= max_distance                      # cut_to_max_distance
    idx = adj_idx[:, mask]
    val = adj_val[mask]
    e = idx.shape[1]
    a = np.zeros((2 * (seq_len + e), seq_len), dtype=np.float32)
    a[np.arange(2 * seq_len), np.repeat(np.arange(seq_len), 2)] = 1.0   # self
    a[2 * seq_len + 2 * np.arange(e), idx[0]] = 1.0     # expand_adjacency_tensor
    a[2 * seq_len + 2 * np.arange(e) + 1, idx[1]] = 1.0
    return a, idx, val


def make_dist_feats(idx, val, seq_len):
    seq_d = np.concatenate(
        [np.zeros(seq_len), np.abs(idx[0] - idx[1]).astype(np.float64)])
    seq_log = np.zeros_like(seq_d)
    pos = seq_d > 0
    seq_log[pos] = np.log(seq_d[pos]) + 1.0
    seq_norm = (seq_log - SEQ_LOG_MEAN) / SEQ_LOG_STD
    cart = np.concatenate([np.zeros(seq_len, np.float64), val.astype(np.float64)])
    cart_norm = (cart - CART_MEAN) / CART_STD
    return np.stack([seq_norm, cart_norm], axis=1).astype(np.float32)


def build_pairwise_structures(adj_idx, adj_val, seq_len, max_distance, lane=128):
    assert seq_len % 2 == 0, "even sequence length assumed for the stride-2 tap split"
    a, idx, val = build_dense_adj(adj_idx, adj_val, seq_len, max_distance)
    n = a.shape[0] // 2                                 # L + E
    npad = ((n + lane - 1) // lane) * lane              # lane-dense edge axis

    adjT_e = np.zeros((seq_len, npad), np.float32)
    adjT_o = np.zeros((seq_len, npad), np.float32)
    adjT_e[:, :n] = a[0::2, :].T
    adjT_o[:, :n] = a[1::2, :].T
    adjT_eo = np.concatenate([adjT_e, adjT_o], axis=1)  # (L, 2*npad) merged gather

    rev = np.zeros((npad, seq_len), np.float32)         # padded rows stay zero,
    rev[:n] = a[0::2, :] + a[1::2, :]                   # so lane padding is inert
    rev_ev = rev[:, 0::2]                               # -> y[:, 2t]   (center tap)
    rev_od = rev[:, 1::2]                               # -> y[:, 2t+1] (right tap)
    l2 = rev_ev.shape[1]
    rev_left = np.concatenate([np.zeros((npad, 1), np.float32),
                               rev_od[:, :l2 - 1]], axis=1)   # -> y[:, 2t-1] (p=1 zero @ t=0)
    rev_all = np.concatenate([rev_ev, rev_od, rev_left], axis=1)  # (npad, 3*l2)

    d = make_dist_feats(idx, val, seq_len)              # (n, 2)
    dT = np.zeros((2, npad), np.float32)
    dT[:, :n] = d.T                                     # lane-dense, transposed

    # {0,1,2}-valued adjacency / scatter matrices are exact in bf16: halves HBM/VMEM
    # of the largest kernel operands (v7x: do NOT swap to int8 -- MXU has no int path).
    return (jnp.asarray(adjT_eo, dtype=jnp.bfloat16),
            jnp.asarray(rev_all, dtype=jnp.bfloat16),
            jnp.asarray(dT))


# ---------------------------------------------------------------------------
# Full forward: batch-invariant barcode folded host-side THROUGH the scatter,
# merged weight blocks built host-side, then ONE fused Pallas kernel for the
# batch-dependent path.
# ---------------------------------------------------------------------------
def custom_forward(seq, adjT_eo, rev_all, dT, params, *, block_b=None):
    # DistanceNet in transposed, lane-dense layout: barcode^T = (12, Npad)
    h = _leaky_relu(params["dn_w1"] @ dT + params["dn_b1"][:, None])
    bcT = _leaky_relu(params["dn_w2"] @ h + params["dn_b2"][:, None])
    nbc = params["dn_w2"].shape[0] // 2                  # 6 barcode channels
    wb0 = params["w_spatial"][:, :nbc, 0]
    wx0 = params["w_spatial"][:, nbc:, 0]
    wb1 = params["w_spatial"][:, :nbc, 1]
    wx1 = params["w_spatial"][:, nbc:, 1]
    z_bc = wb0 @ bcT[:nbc] + wb1 @ bcT[nbc:]             # (Cout, Npad), batch-invariant
    # Fold the barcode through the scatter so the kernel never sees z_bc:
    y_bc_all = jnp.dot(z_bc, rev_all.astype(jnp.float32),
                       precision=lax.Precision.HIGHEST)  # (Cout, 3*L2)

    wx01 = jnp.concatenate([wx0, wx1], axis=1)           # (Cout, 2*Cin) merged spatial conv
    wk_all = jnp.concatenate([params["w_conv"][:, :, 1],  # center tap y[:, 2t]
                              params["w_conv"][:, :, 2],  # right  tap y[:, 2t+1]
                              params["w_conv"][:, :, 0]], # left   tap y[:, 2t-1]
                             axis=1)                      # (Chid, 3*Cout)
    b_conv = params["b_conv"].reshape(-1, 1)
    wf = params["w_final"][:, :, 0]
    bf = params["b_final"].reshape(1, 1)

    B, cin, L = seq.shape
    seq2 = seq.reshape(B * cin, L)        # batch-stack rows for the gather matmul
    return fused_pairwise_layer_n(seq2, B, cin, adjT_eo, y_bc_all, wx01,
                                  rev_all, wk_all, b_conv, wf, bf, block_b=block_b)


# ---------------------------------------------------------------------------
# Plain-JAX reference (uses lax.conv, dense matmuls, explicit RepeatPad concat)
# ---------------------------------------------------------------------------
def reference_forward(seq, adj_idx, adj_val, params, *, seq_len, max_distance):
    a, idx, val = build_dense_adj(adj_idx, adj_val, seq_len, max_distance)
    A = jnp.asarray(a)
    x = seq @ A.T                                                       # (B, 20, 2*(L+E))
    d = jnp.asarray(make_dist_feats(idx, val, seq_len))
    h = _leaky_relu(d @ params["dn_w1"].T + params["dn_b1"])
    barcode = _leaky_relu(h @ params["dn_w2"].T + params["dn_b2"])      # (L+E, 12)
    bcode = barcode.reshape(-1, 6).T                                    # (6, 2*(L+E))
    bcode_exp = jnp.broadcast_to(bcode[None], (x.shape[0],) + bcode.shape)
    x = jnp.concatenate([bcode_exp, x], axis=1)                         # (B, 26, 2*(L+E))
    x = lax.conv_general_dilated(x, params["w_spatial"], (2,), "VALID",
                                 dimension_numbers=("NCH", "OIH", "NCH"))
    rev = A[0::2] + A[1::2]
    x = jnp.maximum(x @ rev, 0.0)                                       # (B, 64, L)
    h = lax.conv_general_dilated(x, params["w_conv"], (2,), [(1, 1)],
                                 dimension_numbers=("NCH", "OIH", "NCH"))
    h = h + params["b_conv"][None, :, None]
    padlen = min(63, h.shape[2])
    hp = jnp.concatenate([h, h[:, :, :padlen]], axis=2)                 # RepeatPad(63)
    nw = (hp.shape[2] - 64) // 64 + 1
    m = jnp.concatenate([jnp.max(hp[:, :, 64 * w:64 * w + 64], axis=2, keepdims=True)
                         for w in range(nw)], axis=2)                   # MaxPool1d(64)
    out = lax.conv_general_dilated(m, params["w_final"], (1,), "VALID",
                                   dimension_numbers=("NCH", "OIH", "NCH"))
    return out + params["b_final"][None, :, None]


if __name__ == "__main__":
    B, C_IN, L = 2, 20, 64   # input_size=20 channels; L chosen so MaxPool1d(64) is valid

    key = jax.random.PRNGKey(0)
    ks = jax.random.split(key, 11)
    params = {
        # DistanceNet(2, 64, 12)  -- 'combined' barcode model (deterministic init)
        "dn_w1": 0.1 * jax.random.normal(ks[0], (64, 2), jnp.float32),
        "dn_b1": 0.1 * jax.random.normal(ks[1], (64,), jnp.float32),
        "dn_w2": 0.1 * jax.random.normal(ks[2], (12, 64), jnp.float32),
        "dn_b2": 0.1 * jax.random.normal(ks[3], (12,), jnp.float32),
        # PairwiseConv.spatial_conv: Conv1d(26, 64, k=2, s=2, bias=False)
        "w_spatial": 0.1 * jax.random.normal(ks[4], (64, 26, 2), jnp.float32),
        # layer_n Conv1d(64, 128, k=3, s=2, p=1, bias=True)
        "w_conv": 0.1 * jax.random.normal(ks[5], (128, 64, 3), jnp.float32),
        "b_conv": 0.1 * jax.random.normal(ks[6], (128,), jnp.float32),
        # layer_n Conv1d(128, 1, k=1, bias=True)
        "w_final": 0.1 * jax.random.normal(ks[7], (1, 128, 1), jnp.float32),
        "b_final": 0.1 * jax.random.normal(ks[8], (1,), jnp.float32),
    }
    seq = jax.random.normal(ks[9], (B, C_IN, L), jnp.float32)

    # --- 1) standalone RepeatPad kernel (the literal spec module) -------------
    xr = jax.random.normal(ks[10], (B, C_IN, L), jnp.float32)
    padding = 63
    rp = jax.block_until_ready(repeat_pad(xr, padding))
    pad_eff = min(padding, L)
    rp_ref = jnp.concatenate([xr, xr[:, :, :pad_eff]], axis=2)
    assert rp.shape == (B, C_IN, L + pad_eff), rp.shape
    np.testing.assert_allclose(np.asarray(rp), np.asarray(rp_ref), rtol=0, atol=0)

    # --- 2) fused network (RepeatPad folded into the pooling stage) ----------
    # synthetic sparse COO adjacency: 60 edges (i, i+3) with cart distances 1..5;
    # cut_to_max_distance(3) keeps the first 30
    adj_idx = np.stack([np.arange(0, 60, dtype=np.int64),
                        np.arange(3, 63, dtype=np.int64)])
    adj_val = np.linspace(1.0, 5.0, 60).astype(np.float32)

    adjT_eo, rev_all, dT = build_pairwise_structures(
        adj_idx, adj_val, L, max_distance=3.0)

    forward = jax.jit(custom_forward)
    out = forward(seq, adjT_eo, rev_all, dT, params)
    out = jax.block_until_ready(out)
    assert out.shape == (B, 1, 1), out.shape

    ref = reference_forward(seq, adj_idx, adj_val, params,
                            seq_len=L, max_distance=3.0)
    np.testing.assert_allclose(np.asarray(out), np.asarray(ref),
                               rtol=1e-3, atol=1e-3)
    print("KERNEL_OK")
</pallas_src>

<mosaic_0001>
module attributes {stable_mosaic.version = 11 : i64} {
  func.func @repeat_pad_kernel(%arg0: i32, %arg1: memref<1x20x64xf32, #tpu.memory_space<vmem>>, %arg2: memref<1x20x127xf32, #tpu.memory_space<vmem>>) attributes {dimension_semantics = [#tpu.dimension_semantics<parallel>], iteration_bounds = array<i64: 2>, scalar_prefetch = 0 : i64, scratch_operands = 0 : i64, tpu.core_type = #tpu.core_type<tc>, window_params = [{transform_indices = @transform_0, window_bounds = array<i64: 1, 20, 64>}, {transform_indices = @transform_1, window_bounds = array<i64: 1, 20, 127>}]} {
    %c0 = arith.constant 0 : index
    %c0_0 = arith.constant 0 : index
    %c0_1 = arith.constant 0 : index
    %0 = vector.load %arg1[%c0, %c0_0, %c0_1] : memref<1x20x64xf32, #tpu.memory_space<vmem>>, vector<1x20x64xf32>
    %c0_2 = arith.constant 0 : index
    %c0_3 = arith.constant 0 : index
    %c0_4 = arith.constant 0 : index
    %1 = vector.load %arg2[%c0_2, %c0_3, %c0_4] : memref<1x20x127xf32, #tpu.memory_space<vmem>>, vector<1x20x64xf32>
    tpu.vector_store %arg2[%c0_2, %c0_3, %c0_4], %0 {strides = array<i32>} : memref<1x20x127xf32, #tpu.memory_space<vmem>>, vector<1x20x64xf32>,
    %2 = vector.extract_strided_slice %0 {offsets = [0, 0, 0], sizes = [1, 20, 63], strides = [1, 1, 1]} : vector<1x20x64xf32> to vector<1x20x63xf32>
    %c0_5 = arith.constant 0 : index
    %c0_6 = arith.constant 0 : index
    %c64 = arith.constant 64 : index
    %3 = vector.load %arg2[%c0_5, %c0_6, %c64] : memref<1x20x127xf32, #tpu.memory_space<vmem>>, vector<1x20x63xf32>
    tpu.vector_store %arg2[%c0_5, %c0_6, %c64], %2 {strides = array<i32>} : memref<1x20x127xf32, #tpu.memory_space<vmem>>, vector<1x20x63xf32>,
    return
  }
  func.func @transform_0(%arg0: i32) -> (i32, i32, i32) {
    %c0_i32 = arith.constant 0 : i32
    %c0_i32_0 = arith.constant 0 : i32
    %c0_i32_1 = arith.constant 0 : i32
    return %arg0, %c0_i32, %c0_i32_0 : i32, i32, i32
  }
  func.func @transform_1(%arg0: i32) -> (i32, i32, i32) {
    %c0_i32 = arith.constant 0 : i32
    %c0_i32_0 = arith.constant 0 : i32
    %c0_i32_1 = arith.constant 0 : i32
    return %arg0, %c0_i32, %c0_i32_0 : i32, i32, i32
  }
}

</mosaic_0001>

<llo_original>
// kernel: tpu_custom_call.1
$region0: #{tpu_custom_call.1}
  #allocation0 [shape = 'u32[]', space=smem, size = 0x4, offset = 0x4, fixed_abs, tag = 'smem constant byte address 0x4 - core index']
  #allocation1 [shape = 'u32[144,128]{1,0:T(1,128)}', space=vmem, size = 0x12000, scoped, tag = 'internal scratch']
  %s0 = inlined_call_operand.vmem [shape: f32[2,20,64], index: 0, kind: input, shape index: {}]
  %s1 = inlined_call_operand.vmem [shape: f32[2,20,127], index: 1, kind: output, shape index: {}]
  %s2 = sld [smem:[#allocation0]]
  $region37: #{tpu_custom_call.1} parent=0
    _
  %s4 = ssub.s32 1, %s2
  %s5 = scalar_select 0, %s4, %s2
  loop: start=0, step=1, limit=4
  $region2: #{tpu_custom_call.1} parent=0 // loop_pre_header
    _
  $region3: #{tpu_custom_call.1} parent=0 // loop_header
    %s7 = sphi 0, %s11
    %p8 = scmp.ge.s32.totalorder %s7, 4
    %s17 = sphi 0, %s19
    %s20 = sphi 0, %s17
    %s21 = sphi 0, %s20
    %s37 = sphi 0, %s21
    %s43 = sphi 0, %s45
    %s46 = sphi 0, %s43
    %s47 = sphi 0, %s46
    %s63 = sphi 0, %s47
  $region4: #{tpu_custom_call.1} parent=0 // loop_header_branch
    %10 = sbr.rel (%p8) target = $region8
  $region5: #{tpu_custom_call.1} parent=0 // loop_body
    %s12 = ssub.s32 %s7, 1
    %s13 = ssub.s32 %s7, 2
    %s14 = sadd.s32 %s7, 1
    %s15 = ssub.s32 %s7, %s14
    %p16 = scmp.eq.s32.totalorder %s15, 0
    %s18 = sadd.s32 %s17, 1
    %s19 = scalar_select %p16, %s17, %s18
    %p22 = pneg %p16
    %p23 = scmp.eq.s32.totalorder %s7, 1
    %p24 = por %p22, %p23
    %p25 = scmp.ne.s32.totalorder %s17, %s20
    %p26 = scmp.eq.s32.totalorder %s7, 0
    %p27 = por %p25, %p26
    %p28 = scmp.ne.s32.totalorder %s17, %s20
    %p29 = scmp.eq.s32.totalorder %s12, 1
    %p30 = por %p28, %p29
    %p31 = scmp.ne.s32.totalorder %s20, %s21
    %p32 = scmp.eq.s32.totalorder %s12, 0
    %p33 = por %p31, %p32
    %p34 = scmp.ne.s32.totalorder %s20, %s21
    %p35 = scmp.eq.s32.totalorder %s13, 1
    %p36 = por %p34, %p35
    %p38 = scmp.ne.s32.totalorder %s21, %s37
    %p39 = scmp.eq.s32.totalorder %s13, 0
    %p40 = por %p38, %p39
    %s41 = ssub.s32 %s7, %s14
    %p42 = scmp.eq.s32.totalorder %s41, 0
    %s44 = sadd.s32 %s43, 1
    %s45 = scalar_select %p42, %s43, %s44
    %p48 = pneg %p42
    %p49 = scmp.eq.s32.totalorder %s7, 1
    %p50 = por %p48, %p49
    %p51 = scmp.ne.s32.totalorder %s43, %s46
    %p52 = scmp.eq.s32.totalorder %s7, 0
    %p53 = por %p51, %p52
    %p54 = scmp.ne.s32.totalorder %s43, %s46
    %p55 = scmp.eq.s32.totalorder %s12, 1
    %p56 = por %p54, %p55
    %p57 = scmp.ne.s32.totalorder %s46, %s47
    %p58 = scmp.eq.s32.totalorder %s12, 0
    %p59 = por %p57, %p58
    %p60 = scmp.ne.s32.totalorder %s46, %s47
    %p61 = scmp.eq.s32.totalorder %s13, 1
    %p62 = por %p60, %p61
    %p64 = scmp.ne.s32.totalorder %s47, %s63
    %p65 = scmp.eq.s32.totalorder %s13, 0
    %p66 = por %p64, %p65
    %p67 = scmp.le.s32.totalorder 1, %s7
    %p68 = scmp.lt.s32.totalorder %s7, 3
    %p69 = pnand %p67, %p68
    %p70 = pneg %p69
    // Predicated region
    $region9: #{tpu_custom_call.1} parent=5 // pred_check
      _
    $region10: #{tpu_custom_call.1} parent=5 // pred_check_branch
      %72 = sbr.rel (%p69) target = $region12
    $region11: #{tpu_custom_call.1} parent=5 // pred_region
      %s73 = ssub.s32 %s7, 1
    $region12: #{tpu_custom_call.1} parent=5 // pred_fallthru
      _
    %p74 = scmp.lt.s32.totalorder %s7, 2
    // Predicated region
    $region13: #{tpu_custom_call.1} parent=5 // pred_check
      %p75 = pneg %p74
    $region14: #{tpu_custom_call.1} parent=5 // pred_check_branch
      %77 = sbr.rel (%p75) target = $region16
    $region15: #{tpu_custom_call.1} parent=5 // pred_region
      // Predicated region
      $region17: #{tpu_custom_call.1} parent=15 // pred_check
        %p78 = pneg %p27
      $region18: #{tpu_custom_call.1} parent=15 // pred_check_branch
        %80 = sbr.rel (%p78) target = $region20
      $region19: #{tpu_custom_call.1} parent=15 // pred_region
        %p81 = scmp.lt.s32.totalorder %s7, 1
        %s82 = scalar_select %p81, %s7, 1
        %s83 = smul.addr %s82, 3
        %s84 = smul.addr %s83, 8
        %s85 = scalar_lea.vmem %s0, %s84
      $region20: #{tpu_custom_call.1} parent=15 // pred_fallthru
        _
    $region16: #{tpu_custom_call.1} parent=5 // pred_fallthru
      _
    %p86 = scmp.le.s32.totalorder 1, %s7
    %p87 = scmp.lt.s32.totalorder %s7, 3
    %p88 = pnand %p86, %p87
    %p89 = pneg %p88
    // Predicated region
    $region21: #{tpu_custom_call.1} parent=5 // pred_check
      _
    $region22: #{tpu_custom_call.1} parent=5 // pred_check_branch
      %91 = sbr.rel (%p88) target = $region24
    $region23: #{tpu_custom_call.1} parent=5 // pred_region
      %s92 = ssub.s32 %s7, 1
      %p93 = scmp.lt.s32.totalorder %s12, 1
      %s94 = scalar_select %p93, %s12, 1
      %s95 = smul.addr %s94, 3
      %s96 = smul.addr %s95, 8
      %s97 = scalar_lea.vmem %s0, %s96
      %p98 = pneg %p33
      %p99 = pneg %p30
      %p100 = pneg %p59
      %p101 = pneg %p56
      %p102 = scmp.lt.s32.totalorder %s12, 1
      %s103 = scalar_select %p102, %s12, 1
      %s104 = smul.addr %s103, 3
      %s105 = smul.addr %s104, 8
      %s106 = scalar_lea.vmem %s1, %s105
      %p107 = scmp.lt.s32.totalorder %s12, 1
      %s108 = scalar_select %p107, %s12, 1
      %s109 = smul.addr %s108, 3
      %s110 = smul.addr %s109, 8
      %s111 = scalar_lea.vmem %s0, %s110
      %p112 = scmp.lt.s32.totalorder %s12, 1
      %s113 = scalar_select %p112, %s12, 1
      %s114 = smul.addr %s113, 3
      %s115 = smul.addr %s114, 8
      %s116 = scalar_lea.vmem %s1, %s115
      %v117 = vld [vmem:[%s111] sm:$0xff]
      %v118 = vld [vmem:[%s111 + $0x8] sm:$0xff]
      %v119 = vld [vmem:[%s111 + $0x10] sm:$0xf]
      %vm120 = vcmask 523264
      %121 = vst.msk [vmem:[%s116] sm:$0xff] %vm120, %v117
      %122 = vst.msk [vmem:[%s116 + $0x8] sm:$0xff] %vm120, %v118
      %vm123 = vcmask 519168
      %124 = vst.msk [vmem:[%s116 + $0x10] sm:$0xf] %vm123, %v119
      %128 = vrot.lane.b32.xlu0 %v117, 64
      %v129 = vpop.permute.xlu0 %128
      %130 = vrot.lane.b32.xlu0 %v118, 64
      %v131 = vpop.permute.xlu0 %130
      %132 = vrot.lane.b32.xlu0 %v119, 64
      %v133 = vpop.permute.xlu0 %132
      %vm137 = vcmask 1039872
      %138 = vst.msk [vmem:[%s116] sm:$0xff] %vm137, %v129
      %139 = vst.msk [vmem:[%s116 + $0x8] sm:$0xff] %vm137, %v131
      %vm140 = vcmask 1035776
      %141 = vst.msk [vmem:[%s116 + $0x10] sm:$0xf] %vm140, %v133
      %p142 = scmp.lt.s32.totalorder %s12, 1
      %s143 = scalar_select %p142, %s12, 1
      %s144 = smul.addr %s143, 3
      %s145 = smul.addr %s144, 8
      %s146 = scalar_lea.vmem %s1, %s145
      // Predicated region
      $region25: #{tpu_custom_call.1} parent=23 // pred_check
        %p147 = pneg %p56
      $region26: #{tpu_custom_call.1} parent=23 // pred_check_branch
        %149 = sbr.rel (%p147) target = $region28
      $region27: #{tpu_custom_call.1} parent=23 // pred_region
        _
      $region28: #{tpu_custom_call.1} parent=23 // pred_fallthru
        _
    $region24: #{tpu_custom_call.1} parent=5 // pred_fallthru
      _
    %p150 = scmp.le.s32.totalorder 2, %s7
    // Predicated region
    $region29: #{tpu_custom_call.1} parent=5 // pred_check
      %p151 = pneg %p150
    $region30: #{tpu_custom_call.1} parent=5 // pred_check_branch
      %153 = sbr.rel (%p151) target = $region32
    $region31: #{tpu_custom_call.1} parent=5 // pred_region
      %s154 = ssub.s32 %s7, 2
      // Predicated region
      $region33: #{tpu_custom_call.1} parent=31 // pred_check
        %p155 = pneg %p62
      $region34: #{tpu_custom_call.1} parent=31 // pred_check_branch
        %157 = sbr.rel (%p155) target = $region36
      $region35: #{tpu_custom_call.1} parent=31 // pred_region
        %p158 = scmp.lt.s32.totalorder %s13, 1
        %s159 = scalar_select %p158, %s13, 1
        %s160 = smul.addr %s159, 3
        %s161 = smul.addr %s160, 8
        %s162 = scalar_lea.vmem %s1, %s161
      $region36: #{tpu_custom_call.1} parent=31 // pred_fallthru
        _
    $region32: #{tpu_custom_call.1} parent=5 // pred_fallthru
      _
  $region6: #{tpu_custom_call.1} parent=0 // loop_footer
    %s11 = sadd.s32 1, %s7
  $region7: #{tpu_custom_call.1} parent=0 // loop_footer_branch
    %6 = sbr.rel target = $region3
  $region8: #{tpu_custom_call.1} parent=0 // loop_exit
    _

</llo_original>
